<compile_context>
chip_gen: v5e
topology: v5e:2x2
jax: 0.10.0
libtpu: 0.0.40
codegen_flags: <defaults>
</compile_context>

<pallas_src>
import jax
import jax.numpy as jnp
from jax.experimental import pallas as pl
from jax.experimental.pallas import tpu as pltpu


_LANES = 128
# 65536 lanes -> 2 MiB x-tile (f32); x double-buffered + out double-buffered
# + params ~= 4.6 MiB VMEM, comfortably under every chip's scoped default.
_DEFAULT_MAX_TILE_B = 65536


def _round_up(n, m):
    return ((n + m - 1) // m) * m


def _choose_tiling(batch, max_tile_b=_DEFAULT_MAX_TILE_B):
    """Pick the lane-dense batch tile.

    * multiple of 128 lanes (lane-dense, unmasked vst)
    * as large as allowed (16K-64K lanes) so per-grid-step overhead amortises
    * >= 2 grid steps when the batch allows it, so the "parallel" axis can be
      sharded across both TensorCores on v7x
    """
    b128 = _round_up(max(int(batch), 1), _LANES)
    half = _round_up(pl.cdiv(b128, 2), _LANES)          # aim for >= 2 tiles
    tile_b = max(_LANES, min(int(max_tile_b), half))
    n_tiles = pl.cdiv(int(batch), tile_b)
    return tile_b, n_tiles, n_tiles * tile_b


def pima_mlp_kernel(w1_ref, b1_ref, w2_ref, b2_ref, w3_ref, b3_ref,
                    x_ref, o_ref):
    xT = x_ref[...].astype(jnp.float32)   # (8, TILE_B)  feature-major, lane-dense

    # hidden1 + ReLU : (12, 8) @ (8, TILE_B) -> (12, TILE_B)   (MXU)
    h1 = jnp.dot(w1_ref[...], xT, preferred_element_type=jnp.float32) + b1_ref[...]
    h1 = jnp.maximum(h1, 0.0)

    # hidden2 + ReLU : (8, 12) @ (12, TILE_B) -> (8, TILE_B)   (MXU)
    h2 = jnp.dot(w2_ref[...], h1, preferred_element_type=jnp.float32) + b2_ref[...]
    h2 = jnp.maximum(h2, 0.0)

    # output + Sigmoid: 1-wide layer as VPU broadcast-mul + XLU sublane reduce
    # + EUP sigmoid (separate VLIW slots from the MXU) -> (1, TILE_B)
    logits = jnp.sum(h2 * w3_ref[...], axis=0, keepdims=True) + b3_ref[...]
    o_ref[...] = jax.nn.sigmoid(logits).astype(o_ref.dtype)


def pima_classifier_forward_feature_major(xT, params, *,
                                          max_tile_b=_DEFAULT_MAX_TILE_B,
                                          out_dtype=jnp.float32):
    """Feature-major entry point.  xT: (8, B).  Returns (1, B).

    Preferred path: a producer that emits (8, B) activations avoids the extra
    HBM transpose pass entirely.
    """
    F, B = xT.shape
    assert F == 8
    tile_b, n_tiles, b_pad = _choose_tiling(B, max_tile_b)
    if b_pad != B:
        xT = jnp.pad(xT, ((0, 0), (0, b_pad - B)))   # pad cols -> sigmoid(b3), sliced off

    # PyTorch nn.Linear convention: W (out, in), b (out,).  Biases as columns.
    w1 = params["w1"].astype(jnp.float32).reshape(12, 8)
    b1 = params["b1"].astype(jnp.float32).reshape(12, 1)
    w2 = params["w2"].astype(jnp.float32).reshape(8, 12)
    b2 = params["b2"].astype(jnp.float32).reshape(8, 1)
    w3 = params["w3"].astype(jnp.float32).reshape(1, 8).T    # (8, 1) column
    b3 = params["b3"].astype(jnp.float32).reshape(1, 1)

    def const_spec(shape):
        # full-array block + constant index_map -> DMA'd once, VMEM-resident,
        # no per-step slicing inside the kernel.
        return pl.BlockSpec(shape, lambda i: (0, 0))

    out = pl.pallas_call(
        pima_mlp_kernel,
        out_shape=jax.ShapeDtypeStruct((1, b_pad), out_dtype),
        grid_spec=pltpu.PrefetchScalarGridSpec(
            num_scalar_prefetch=0,
            grid=(n_tiles,),
            in_specs=[
                const_spec((12, 8)), const_spec((12, 1)),
                const_spec((8, 12)), const_spec((8, 1)),
                const_spec((8, 1)), const_spec((1, 1)),
                # x tile: batch on the 128-lane axis, double-buffered by the pipeline
                pl.BlockSpec((8, tile_b), lambda i: (0, i)),
            ],
            out_specs=pl.BlockSpec((1, tile_b), lambda i: (0, i)),
        ),
        compiler_params=pltpu.CompilerParams(
            dimension_semantics=("parallel",),     # v7x: shard batch tiles across 2 TCs
            vmem_limit_bytes=32 * 1024 * 1024,     # raise v5e's 16 MiB scoped default
        ),
    )(w1, b1, w2, b2, w3, b3, xT)

    return out[:, :B]


def pima_classifier_forward(x, params, *, max_tile_b=_DEFAULT_MAX_TILE_B):
    """PyTorch-layout entry point.  x: (B, 8) float.  Returns (B, 1).

    If the producer can emit feature-major (8, B) activations, call
    pima_classifier_forward_feature_major directly and skip this transpose
    (it costs a full extra HBM pass over x for this memory-bound kernel).
    """
    B, F = x.shape
    assert F == 8
    xT = x.astype(jnp.float32).T
    out = pima_classifier_forward_feature_major(xT, params, max_tile_b=max_tile_b)
    return out.T


def init_params(key):
    """Deterministic synthetic params in PyTorch nn.Linear layout: W (out,in), b (out,)."""
    k1, k2, k3, k4, k5, k6 = jax.random.split(key, 6)
    return {
        "w1": jax.random.normal(k1, (12, 8), jnp.float32) * 0.1,
        "b1": jax.random.normal(k2, (12,), jnp.float32) * 0.1,
        "w2": jax.random.normal(k3, (8, 12), jnp.float32) * 0.1,
        "b2": jax.random.normal(k4, (8,), jnp.float32) * 0.1,
        "w3": jax.random.normal(k5, (1, 8), jnp.float32) * 0.1,
        "b3": jax.random.normal(k6, (1,), jnp.float32) * 0.1,
    }


def reference_forward(x, p):
    hp = jax.lax.Precision.HIGHEST
    h1 = jnp.maximum(jnp.dot(x, p["w1"].T, precision=hp) + p["b1"], 0.0)
    h2 = jnp.maximum(jnp.dot(h1, p["w2"].T, precision=hp) + p["b2"], 0.0)
    return jax.nn.sigmoid(jnp.dot(h2, p["w3"].T, precision=hp) + p["b3"])


if __name__ == "__main__":
    key = jax.random.PRNGKey(0)
    kx, kp = jax.random.split(key)

    B = 1000  # -> 2 tiles of 512 lanes: exercises pipelining + v7x dual-TC sharding
    x = jax.random.normal(kx, (B, 8), jnp.float32)
    params = init_params(kp)

    out = pima_classifier_forward(x, params)
    out = jax.block_until_ready(out)

    ref = reference_forward(x, params)
    assert out.shape == (B, 1)
    max_err = float(jnp.max(jnp.abs(out - ref)))
    assert jnp.allclose(out, ref, atol=1e-3, rtol=1e-3), max_err

    # Feature-major path (no wrapper transpose) must agree as well.
    out_fm = jax.block_until_ready(
        pima_classifier_forward_feature_major(x.T, params))
    assert out_fm.shape == (1, B)
    assert jnp.allclose(out_fm.T, ref, atol=1e-3, rtol=1e-3)

    print("KERNEL_OK")
</pallas_src>

<mosaic_0001>
module attributes {stable_mosaic.version = 11 : i64} {
  func.func @pima_mlp_kernel(%arg0: i32, %arg1: memref<12x8xf32, #tpu.memory_space<vmem>>, %arg2: memref<12x1xf32, #tpu.memory_space<vmem>>, %arg3: memref<8x12xf32, #tpu.memory_space<vmem>>, %arg4: memref<8x1xf32, #tpu.memory_space<vmem>>, %arg5: memref<8x1xf32, #tpu.memory_space<vmem>>, %arg6: memref<1x1xf32, #tpu.memory_space<vmem>>, %arg7: memref<8x512xf32, #tpu.memory_space<vmem>>, %arg8: memref<1x512xf32, #tpu.memory_space<vmem>>) attributes {dimension_semantics = [#tpu.dimension_semantics<parallel>], iteration_bounds = array<i64: 2>, scalar_prefetch = 0 : i64, scratch_operands = 0 : i64, tpu.core_type = #tpu.core_type<tc>, window_params = [{pipeline_mode = #tpu.pipeline_mode<synchronous>, transform_indices = @transform_0, window_bounds = array<i64: 12, 8>}, {pipeline_mode = #tpu.pipeline_mode<synchronous>, transform_indices = @transform_1, window_bounds = array<i64: 12, 1>}, {pipeline_mode = #tpu.pipeline_mode<synchronous>, transform_indices = @transform_2, window_bounds = array<i64: 8, 12>}, {pipeline_mode = #tpu.pipeline_mode<synchronous>, transform_indices = @transform_3, window_bounds = array<i64: 8, 1>}, {pipeline_mode = #tpu.pipeline_mode<synchronous>, transform_indices = @transform_4, window_bounds = array<i64: 8, 1>}, {pipeline_mode = #tpu.pipeline_mode<synchronous>, transform_indices = @transform_5, window_bounds = array<i64: 1, 1>}, {transform_indices = @transform_6, window_bounds = array<i64: 8, 512>}, {transform_indices = @transform_7, window_bounds = array<i64: 1, 512>}]} {
    %c0 = arith.constant 0 : index
    %c0_0 = arith.constant 0 : index
    %0 = vector.load %arg7[%c0, %c0_0] : memref<8x512xf32, #tpu.memory_space<vmem>>, vector<8x512xf32>
    %c0_1 = arith.constant 0 : index
    %c0_2 = arith.constant 0 : index
    %1 = vector.load %arg1[%c0_1, %c0_2] : memref<12x8xf32, #tpu.memory_space<vmem>>, vector<12x8xf32>
    %cst = arith.constant dense<0.000000e+00> : vector<12x512xf32>
    %2 = tpu.matmul %1, %0, %cst {dimension_numbers = #tpu.dot_dimension_numbers<[1], [0], [0], [1], [0, 0, 1, 1], [], []>} : vector<12x8xf32>, vector<8x512xf32>, vector<12x512xf32> -> vector<12x512xf32>
    %c0_3 = arith.constant 0 : index
    %c0_4 = arith.constant 0 : index
    %3 = vector.load %arg2[%c0_3, %c0_4] : memref<12x1xf32, #tpu.memory_space<vmem>>, vector<12x1xf32>
    %4 = vector.broadcast %3 : vector<12x1xf32> to vector<12x512xf32>
    %5 = arith.addf %2, %4 : vector<12x512xf32>
    %cst_5 = arith.constant 0.000000e+00 : f32
    %6 = vector.broadcast %cst_5 : f32 to vector<12x512xf32>
    %7 = arith.maximumf %5, %6 : vector<12x512xf32>
    %c0_6 = arith.constant 0 : index
    %c0_7 = arith.constant 0 : index
    %8 = vector.load %arg3[%c0_6, %c0_7] : memref<8x12xf32, #tpu.memory_space<vmem>>, vector<8x12xf32>
    %cst_8 = arith.constant dense<0.000000e+00> : vector<8x512xf32>
    %9 = tpu.matmul %8, %7, %cst_8 {dimension_numbers = #tpu.dot_dimension_numbers<[1], [0], [0], [1], [0, 0, 1, 1], [], []>} : vector<8x12xf32>, vector<12x512xf32>, vector<8x512xf32> -> vector<8x512xf32>
    %c0_9 = arith.constant 0 : index
    %c0_10 = arith.constant 0 : index
    %10 = vector.load %arg4[%c0_9, %c0_10] : memref<8x1xf32, #tpu.memory_space<vmem>>, vector<8x1xf32>
    %11 = vector.broadcast %10 : vector<8x1xf32> to vector<8x512xf32>
    %12 = arith.addf %9, %11 : vector<8x512xf32>
    %cst_11 = arith.constant 0.000000e+00 : f32
    %13 = vector.broadcast %cst_11 : f32 to vector<8x512xf32>
    %14 = arith.maximumf %12, %13 : vector<8x512xf32>
    %c0_12 = arith.constant 0 : index
    %c0_13 = arith.constant 0 : index
    %15 = vector.load %arg5[%c0_12, %c0_13] : memref<8x1xf32, #tpu.memory_space<vmem>>, vector<8x1xf32>
    %16 = vector.broadcast %15 : vector<8x1xf32> to vector<8x512xf32>
    %17 = arith.mulf %14, %16 : vector<8x512xf32>
    %cst_14 = arith.constant dense<0.000000e+00> : vector<512xf32>
    %18 = vector.multi_reduction <add>, %17, %cst_14 [0] : vector<8x512xf32> to vector<512xf32>
    %19 = vector.shape_cast %18 : vector<512xf32> to vector<1x512xf32>
    %c0_15 = arith.constant 0 : index
    %c0_16 = arith.constant 0 : index
    %20 = vector.load %arg6[%c0_15, %c0_16] : memref<1x1xf32, #tpu.memory_space<vmem>>, vector<1x1xf32>
    %21 = vector.broadcast %20 : vector<1x1xf32> to vector<1x512xf32>
    %22 = arith.addf %19, %21 : vector<1x512xf32>
    %23 = arith.negf %22 : vector<1x512xf32>
    %24 = math.exp %23 : vector<1x512xf32>
    %cst_17 = arith.constant 1.000000e+00 : f32
    %25 = vector.broadcast %cst_17 : f32 to vector<1x512xf32>
    %26 = arith.addf %25, %24 : vector<1x512xf32>
    %27 = arith.divf %25, %26 : vector<1x512xf32>
    %c0_18 = arith.constant 0 : index
    %c0_19 = arith.constant 0 : index
    %28 = vector.load %arg8[%c0_18, %c0_19] : memref<1x512xf32, #tpu.memory_space<vmem>>, vector<1x512xf32>
    tpu.vector_store %arg8[%c0_18, %c0_19], %27 {strides = array<i32>} : memref<1x512xf32, #tpu.memory_space<vmem>>, vector<1x512xf32>,
    return
  }
  func.func @transform_0(%arg0: i32) -> (i32, i32) {
    %c0_i32 = arith.constant 0 : i32
    %c0_i32_0 = arith.constant 0 : i32
    %c0_i32_1 = arith.constant 0 : i32
    return %c0_i32, %c0_i32_0 : i32, i32
  }
  func.func @transform_1(%arg0: i32) -> (i32, i32) {
    %c0_i32 = arith.constant 0 : i32
    %c0_i32_0 = arith.constant 0 : i32
    %c0_i32_1 = arith.constant 0 : i32
    return %c0_i32, %c0_i32_0 : i32, i32
  }
  func.func @transform_2(%arg0: i32) -> (i32, i32) {
    %c0_i32 = arith.constant 0 : i32
    %c0_i32_0 = arith.constant 0 : i32
    %c0_i32_1 = arith.constant 0 : i32
    return %c0_i32, %c0_i32_0 : i32, i32
  }
  func.func @transform_3(%arg0: i32) -> (i32, i32) {
    %c0_i32 = arith.constant 0 : i32
    %c0_i32_0 = arith.constant 0 : i32
    %c0_i32_1 = arith.constant 0 : i32
    return %c0_i32, %c0_i32_0 : i32, i32
  }
  func.func @transform_4(%arg0: i32) -> (i32, i32) {
    %c0_i32 = arith.constant 0 : i32
    %c0_i32_0 = arith.constant 0 : i32
    %c0_i32_1 = arith.constant 0 : i32
    return %c0_i32, %c0_i32_0 : i32, i32
  }
  func.func @transform_5(%arg0: i32) -> (i32, i32) {
    %c0_i32 = arith.constant 0 : i32
    %c0_i32_0 = arith.constant 0 : i32
    %c0_i32_1 = arith.constant 0 : i32
    return %c0_i32, %c0_i32_0 : i32, i32
  }
  func.func @transform_6(%arg0: i32) -> (i32, i32) {
    %c0_i32 = arith.constant 0 : i32
    %c0_i32_0 = arith.constant 0 : i32
    return %c0_i32, %arg0 : i32, i32
  }
  func.func @transform_7(%arg0: i32) -> (i32, i32) {
    %c0_i32 = arith.constant 0 : i32
    %c0_i32_0 = arith.constant 0 : i32
    return %c0_i32, %arg0 : i32, i32
  }
}

</mosaic_0001>

<llo_original>
// kernel: tpu_custom_call.1
$region0: #{tpu_custom_call.1}
  #allocation0 [shape = 'u32[]', space=smem, size = 0x4, offset = 0x4, fixed_abs, tag = 'smem constant byte address 0x4 - core index']
  #allocation1 [shape = 'u32[72,128]{1,0:T(1,128)}', space=vmem, size = 0x9000, scoped, tag = 'internal scratch']
  #allocation2 [shape = 'f32[1,1]{1,0:T(1,128)S(1)}', space=vmem, size = 0x200, scoped, tag = 'scoped memory for tpu_custom_call.1']
  %s0 = inlined_call_operand.vmem [shape: f32[12,8], index: 0, kind: input, shape index: {}]
  %s1 = inlined_call_operand.vmem [shape: f32[12,1], index: 1, kind: input, shape index: {}]
  %s2 = inlined_call_operand.vmem [shape: f32[8,12], index: 2, kind: input, shape index: {}]
  %s3 = inlined_call_operand.vmem [shape: f32[8,1], index: 3, kind: input, shape index: {}]
  %s4 = inlined_call_operand.vmem [shape: f32[8,1], index: 4, kind: input, shape index: {}]
  %s5 = inlined_call_operand.<no memory space> [shape: f32[1,1], index: 5, kind: input, shape index: {}]
  %s6 = inlined_call_operand.hbm [shape: f32[8,1024], index: 6, kind: input, shape index: {}]
  %s7 = inlined_call_operand.hbm [shape: f32[1,1024], index: 7, kind: output, shape index: {}]
  %s8 = sld [smem:[#allocation0]]
  $region65: #{tpu_custom_call.1} parent=0
    _
  %s10 = ssub.s32 1, %s8
  %s11 = scalar_select 0, %s10, %s8
  %v12 = vstv %s5
  %13 = vst [vmem:[#allocation2] sm:$0x1] %v12
  $region1: #{tpu_custom_call.1} parent=0
    #allocation3 [shape = 'u8[32768]{0}', space=vmem, size = 0x8000, scoped, tag = 'input window, operand 6']
    #allocation4 [shape = 's32[2]{0}', space=sflag, size = 0x8, scoped, tag = 'scoped memory for tpu_custom_call.1']
    #allocation5 [shape = 's32[2]{0}', space=sflag, size = 0x8, scoped, tag = 'scoped memory for tpu_custom_call.1']
    #allocation6 [shape = 'u8[4096]{0}', space=vmem, size = 0x1000, scoped, tag = 'output window, operand 0']
    %14 = vsyncpa [#allocation4], 0
    %s15 = scalar_lea.sflag [#allocation4], 1
    %16 = vsyncpa %s15, 0
    %17 = vsyncpa [#allocation5], 0
    %s18 = scalar_lea.sflag [#allocation5], 1
    %19 = vsyncpa %s18, 0
    loop: start=0, step=1, limit=4
    $region2: #{tpu_custom_call.1} parent=1 // loop_pre_header
      _
    $region3: #{tpu_custom_call.1} parent=1 // loop_header
      %s21 = sphi 0, %s25
      %p22 = scmp.ge.s32.totalorder %s21, 4
      %s29 = sphi 0, %s29
      %s31 = sphi 0, %s29
      %s32 = sphi 0, %s31
      %s46 = sphi 0, %s32
      %s50 = sphi 0, %s50
      %s52 = sphi 0, %s50
      %s53 = sphi 0, %s52
      %s67 = sphi 0, %s53
      %s71 = sphi 0, %s71
      %s73 = sphi 0, %s71
      %s74 = sphi 0, %s73
      %s88 = sphi 0, %s74
      %s92 = sphi 0, %s92
      %s94 = sphi 0, %s92
      %s95 = sphi 0, %s94
      %s109 = sphi 0, %s95
      %s113 = sphi 0, %s113
      %s115 = sphi 0, %s113
      %s116 = sphi 0, %s115
      %s130 = sphi 0, %s116
      %s134 = sphi 0, %s134
      %s136 = sphi 0, %s134
      %s137 = sphi 0, %s136
      %s151 = sphi 0, %s137
      %s157 = sphi 0, %s159
      %s160 = sphi 0, %s157
      %s161 = sphi 0, %s160
      %s177 = sphi 0, %s161
      %s183 = sphi 0, %s185
      %s186 = sphi 0, %s183
      %s187 = sphi 0, %s186
      %s203 = sphi 0, %s187
    $region4: #{tpu_custom_call.1} parent=1 // loop_header_branch
      %24 = sbr.rel (%p22) target = $region8
    $region5: #{tpu_custom_call.1} parent=1 // loop_body
      %s26 = ssub.s32 %s21, 1
      %s27 = ssub.s32 %s21, 2
      %s28 = sadd.s32 %s21, 1
      %s30 = sadd.s32 %s29, 1
      %p33 = scmp.eq.s32.totalorder %s21, 1
      %p34 = scmp.ne.s32.totalorder %s29, %s31
      %p35 = scmp.eq.s32.totalorder %s21, 0
      %p36 = por %p34, %p35
      %p37 = scmp.ne.s32.totalorder %s29, %s31
      %p38 = scmp.eq.s32.totalorder %s26, 1
      %p39 = por %p37, %p38
      %p40 = scmp.ne.s32.totalorder %s31, %s32
      %p41 = scmp.eq.s32.totalorder %s26, 0
      %p42 = por %p40, %p41
      %p43 = scmp.ne.s32.totalorder %s31, %s32
      %p44 = scmp.eq.s32.totalorder %s27, 1
      %p45 = por %p43, %p44
      %p47 = scmp.ne.s32.totalorder %s32, %s46
      %p48 = scmp.eq.s32.totalorder %s27, 0
      %p49 = por %p47, %p48
      %s51 = sadd.s32 %s50, 1
      %p54 = scmp.eq.s32.totalorder %s21, 1
      %p55 = scmp.ne.s32.totalorder %s50, %s52
      %p56 = scmp.eq.s32.totalorder %s21, 0
      %p57 = por %p55, %p56
      %p58 = scmp.ne.s32.totalorder %s50, %s52
      %p59 = scmp.eq.s32.totalorder %s26, 1
      %p60 = por %p58, %p59
      %p61 = scmp.ne.s32.totalorder %s52, %s53
      %p62 = scmp.eq.s32.totalorder %s26, 0
      %p63 = por %p61, %p62
      %p64 = scmp.ne.s32.totalorder %s52, %s53
      %p65 = scmp.eq.s32.totalorder %s27, 1
      %p66 = por %p64, %p65
      %p68 = scmp.ne.s32.totalorder %s53, %s67
      %p69 = scmp.eq.s32.totalorder %s27, 0
      %p70 = por %p68, %p69
      %s72 = sadd.s32 %s71, 1
      %p75 = scmp.eq.s32.totalorder %s21, 1
      %p76 = scmp.ne.s32.totalorder %s71, %s73
      %p77 = scmp.eq.s32.totalorder %s21, 0
      %p78 = por %p76, %p77
      %p79 = scmp.ne.s32.totalorder %s71, %s73
      %p80 = scmp.eq.s32.totalorder %s26, 1
      %p81 = por %p79, %p80
      %p82 = scmp.ne.s32.totalorder %s73, %s74
      %p83 = scmp.eq.s32.totalorder %s26, 0
      %p84 = por %p82, %p83
      %p85 = scmp.ne.s32.totalorder %s73, %s74
      %p86 = scmp.eq.s32.totalorder %s27, 1
      %p87 = por %p85, %p86
      %p89 = scmp.ne.s32.totalorder %s74, %s88
      %p90 = scmp.eq.s32.totalorder %s27, 0
      %p91 = por %p89, %p90
      %s93 = sadd.s32 %s92, 1
      %p96 = scmp.eq.s32.totalorder %s21, 1
      %p97 = scmp.ne.s32.totalorder %s92, %s94
      %p98 = scmp.eq.s32.totalorder %s21, 0
      %p99 = por %p97, %p98
      %p100 = scmp.ne.s32.totalorder %s92, %s94
      %p101 = scmp.eq.s32.totalorder %s26, 1
      %p102 = por %p100, %p101
      %p103 = scmp.ne.s32.totalorder %s94, %s95
      %p104 = scmp.eq.s32.totalorder %s26, 0
      %p105 = por %p103, %p104
      %p106 = scmp.ne.s32.totalorder %s94, %s95
      %p107 = scmp.eq.s32.totalorder %s27, 1
      %p108 = por %p106, %p107
      %p110 = scmp.ne.s32.totalorder %s95, %s109
      %p111 = scmp.eq.s32.totalorder %s27, 0
      %p112 = por %p110, %p111
      %s114 = sadd.s32 %s113, 1
      %p117 = scmp.eq.s32.totalorder %s21, 1
      %p118 = scmp.ne.s32.totalorder %s113, %s115
      %p119 = scmp.eq.s32.totalorder %s21, 0
      %p120 = por %p118, %p119
      %p121 = scmp.ne.s32.totalorder %s113, %s115
      %p122 = scmp.eq.s32.totalorder %s26, 1
      %p123 = por %p121, %p122
      %p124 = scmp.ne.s32.totalorder %s115, %s116
      %p125 = scmp.eq.s32.totalorder %s26, 0
      %p126 = por %p124, %p125
      %p127 = scmp.ne.s32.totalorder %s115, %s116
      %p128 = scmp.eq.s32.totalorder %s27, 1
      %p129 = por %p127, %p128
      %p131 = scmp.ne.s32.totalorder %s116, %s130
      %p132 = scmp.eq.s32.totalorder %s27, 0
      %p133 = por %p131, %p132
      %s135 = sadd.s32 %s134, 1
      %p138 = scmp.eq.s32.totalorder %s21, 1
      %p139 = scmp.ne.s32.totalorder %s134, %s136
      %p140 = scmp.eq.s32.totalorder %s21, 0
      %p141 = por %p139, %p140
      %p142 = scmp.ne.s32.totalorder %s134, %s136
      %p143 = scmp.eq.s32.totalorder %s26, 1
      %p144 = por %p142, %p143
      %p145 = scmp.ne.s32.totalorder %s136, %s137
      %p146 = scmp.eq.s32.totalorder %s26, 0
      %p147 = por %p145, %p146
      %p148 = scmp.ne.s32.totalorder %s136, %s137
      %p149 = scmp.eq.s32.totalorder %s27, 1
      %p150 = por %p148, %p149
      %p152 = scmp.ne.s32.totalorder %s137, %s151
      %p153 = scmp.eq.s32.totalorder %s27, 0
      %p154 = por %p152, %p153
      %s155 = ssub.s32 %s21, %s28
      %p156 = scmp.eq.s32.totalorder %s155, 0
      %s158 = sadd.s32 %s157, 1
      %s159 = scalar_select %p156, %s157, %s158
      %p162 = pneg %p156
      %p163 = scmp.eq.s32.totalorder %s21, 1
      %p164 = por %p162, %p163
      %p165 = scmp.ne.s32.totalorder %s157, %s160
      %p166 = scmp.eq.s32.totalorder %s21, 0
      %p167 = por %p165, %p166
      %p168 = scmp.ne.s32.totalorder %s157, %s160
      %p169 = scmp.eq.s32.totalorder %s26, 1
      %p170 = por %p168, %p169
      %p171 = scmp.ne.s32.totalorder %s160, %s161
      %p172 = scmp.eq.s32.totalorder %s26, 0
      %p173 = por %p171, %p172
      %p174 = scmp.ne.s32.totalorder %s160, %s161
      %p175 = scmp.eq.s32.totalorder %s27, 1
      %p176 = por %p174, %p175
      %p178 = scmp.ne.s32.totalorder %s161, %s177
      %p179 = scmp.eq.s32.totalorder %s27, 0
      %p180 = por %p178, %p179
      %s181 = ssub.s32 %s21, %s28
      %p182 = scmp.eq.s32.totalorder %s181, 0
      %s184 = sadd.s32 %s183, 1
      %s185 = scalar_select %p182, %s183, %s184
      %p188 = pneg %p182
      %p189 = scmp.eq.s32.totalorder %s21, 1
      %p190 = por %p188, %p189
      %p191 = scmp.ne.s32.totalorder %s183, %s186
      %p192 = scmp.eq.s32.totalorder %s21, 0
      %p193 = por %p191, %p192
      %p194 = scmp.ne.s32.totalorder %s183, %s186
      %p195 = scmp.eq.s32.totalorder %s26, 1
      %p196 = por %p194, %p195
      %p197 = scmp.ne.s32.totalorder %s186, %s187
      %p198 = scmp.eq.s32.totalorder %s26, 0
      %p199 = por %p197, %p198
      %p200 = scmp.ne.s32.totalorder %s186, %s187
      %p201 = scmp.eq.s32.totalorder %s27, 1
      %p202 = por %p200, %p201
      %p204 = scmp.ne.s32.totalorder %s187, %s203
      %p205 = scmp.eq.s32.totalorder %s27, 0
      %p206 = por %p204, %p205
      %p207 = scmp.le.s32.totalorder 1, %s21
      %p208 = scmp.lt.s32.totalorder %s21, 3
      %p209 = pnand %p207, %p208
      %p210 = pneg %p209
      // Predicated region
      $region9: #{tpu_custom_call.1} parent=5 // pred_check
        _
      $region10: #{tpu_custom_call.1} parent=5 // pred_check_branch
        %212 = sbr.rel (%p209) target = $region12
      $region11: #{tpu_custom_call.1} parent=5 // pred_region
        %s213 = ssub.s32 %s21, 1
        // Predicated region
        $region13: #{tpu_custom_call.1} parent=11 // pred_check
          %p214 = pneg %p42
        $region14: #{tpu_custom_call.1} parent=11 // pred_check_branch
          %216 = sbr.rel (%p214) target = $region16
        $region15: #{tpu_custom_call.1} parent=11 // pred_region
          _
        $region16: #{tpu_custom_call.1} parent=11 // pred_fallthru
          _
        // Predicated region
        $region17: #{tpu_custom_call.1} parent=11 // pred_check
          %p217 = pneg %p63
        $region18: #{tpu_custom_call.1} parent=11 // pred_check_branch
          %219 = sbr.rel (%p217) target = $region20
        $region19: #{tpu_custom_call.1} parent=11 // pred_region
          _
        $region20: #{tpu_custom_call.1} parent=11 // pred_fallthru
          _
        // Predicated region
        $region21: #{tpu_custom_call.1} parent=11 // pred_check
          %p220 = pneg %p84
        $region22: #{tpu_custom_call.1} parent=11 // pred_check_branch
          %222 = sbr.rel (%p220) target = $region24
        $region23: #{tpu_custom_call.1} parent=11 // pred_region
          _
        $region24: #{tpu_custom_call.1} parent=11 // pred_fallthru
          _
        // Predicated region
        $region25: #{tpu_custom_call.1} parent=11 // pred_check
          %p223 = pneg %p105
        $region26: #{tpu_custom_call.1} parent=11 // pred_check_branch
          %225 = sbr.rel (%p223) target = $region28
        $region27: #{tpu_custom_call.1} parent=11 // pred_region
          _
        $region28: #{tpu_custom_call.1} parent=11 // pred_fallthru
          _
        // Predicated region
        $region29: #{tpu_custom_call.1} parent=11 // pred_check
          %p226 = pneg %p126
        $region30: #{tpu_custom_call.1} parent=11 // pred_check_branch
          %228 = sbr.rel (%p226) target = $region32
        $region31: #{tpu_custom_call.1} parent=11 // pred_region
          _
        $region32: #{tpu_custom_call.1} parent=11 // pred_fallthru
          _
        // Predicated region
        $region33: #{tpu_custom_call.1} parent=11 // pred_check
          %p229 = pneg %p147
        $region34: #{tpu_custom_call.1} parent=11 // pred_check_branch
          %231 = sbr.rel (%p229) target = $region36
        $region35: #{tpu_custom_call.1} parent=11 // pred_region
          _
        $region36: #{tpu_custom_call.1} parent=11 // pred_fallthru
          _
      $region12: #{tpu_custom_call.1} parent=5 // pred_fallthru
        _
      %p232 = scmp.lt.s32.totalorder %s21, 2
      // Predicated region
      $region37: #{tpu_custom_call.1} parent=5 // pred_check
        %p233 = pneg %p232
      $region38: #{tpu_custom_call.1} parent=5 // pred_check_branch
        %235 = sbr.rel (%p233) target = $region40
      $region39: #{tpu_custom_call.1} parent=5 // pred_region
        // Predicated region
        $region41: #{tpu_custom_call.1} parent=39 // pred_check
          %p236 = pneg %p167
        $region42: #{tpu_custom_call.1} parent=39 // pred_check_branch
          %238 = sbr.rel (%p236) target = $region44
        $region43: #{tpu_custom_call.1} parent=39 // pred_region
          %s239 = sand.u32 %s157, 1
          %s240 = scalar_lea.sflag [#allocation4], %s239
          %s241 = sand.u32 %s157, 1
          %s242 = smul.addr %s241, 32
          %s243 = scalar_lea.vmem [#allocation3], %s242
          %s244 = smul.u32 4, %s21
          %246 = vsyncadd %s240, 0
          %s247 = smul.addr %s244, 8
          %s248 = scalar_lea.hbm %s6, %s247
          %s250 = sshll.u32 %s248, 4
          %s251 = int_to_ptr.hbm [resolvable:$true] %s250
          %s252 = sshll.u32 %s243, 4
          %s253 = int_to_ptr.vmem [resolvable:$true] %s252
          %255 = dma.hbm_to_vmem [thread:$0]  %s251, 512, %s253, %s240
        $region44: #{tpu_custom_call.1} parent=39 // pred_fallthru
          _
      $region40: #{tpu_custom_call.1} parent=5 // pred_fallthru
        _
      %p256 = scmp.le.s32.totalorder 1, %s21
      %p257 = scmp.lt.s32.totalorder %s21, 3
      %p258 = pnand %p256, %p257
      %p259 = pneg %p258
      // Predicated region
      $region45: #{tpu_custom_call.1} parent=5 // pred_check
        _
      $region46: #{tpu_custom_call.1} parent=5 // pred_check_branch
        %261 = sbr.rel (%p258) target = $region48
      $region47: #{tpu_custom_call.1} parent=5 // pred_region
        %s262 = ssub.s32 %s21, 1
        %s263 = sand.u32 %s160, 1
        %s264 = scalar_lea.sflag [#allocation4], %s263
        %s265 = sand.u32 %s160, 1
        %s266 = smul.addr %s265, 32
        %s267 = scalar_lea.vmem [#allocation3], %s266
        // Predicated region
        $region49: #{tpu_custom_call.1} parent=47 // pred_check
          %p268 = pneg %p173
        $region50: #{tpu_custom_call.1} parent=47 // pred_check_branch
          %270 = sbr.rel (%p268) target = $region52
        $region51: #{tpu_custom_call.1} parent=47 // pred_region
          %272 = dma.done %s264, 512
        $region52: #{tpu_custom_call.1} parent=47 // pred_fallthru
          _
        %p273 = pneg %p42
        %p274 = pneg %p39
        %p275 = pneg %p63
        %p276 = pneg %p60
        %p277 = pneg %p84
        %p278 = pneg %p81
        %p279 = pneg %p105
        %p280 = pneg %p102
        %p281 = pneg %p126
        %p282 = pneg %p123
        %p283 = pneg %p147
        %p284 = pneg %p144
        %s285 = sand.u32 %s160, 1
        %s286 = scalar_lea.sflag [#allocation4], %s285
        %s287 = sand.u32 %s160, 1
        %s288 = smul.addr %s287, 32
        %s289 = scalar_lea.vmem [#allocation3], %s288
        %p290 = pneg %p173
        %p291 = pneg %p170
        %p292 = pneg %p199
        %p293 = pneg %p196
        %s294 = sand.u32 %s186, 1
        %s295 = scalar_lea.sflag [#allocation5], %s294
        %s296 = sand.u32 %s186, 1
        %s297 = smul.addr %s296, 4
        %s298 = scalar_lea.vmem [#allocation6], %s297
        %s299 = smul.u32 4, %s26
        %s300 = smul.u32 4, %s26
        %v301 = vld [vmem:[%s267] sm:$0xff]
        %v302 = vld [vmem:[%s267 + $0x8] sm:$0xff]
        %v303 = vld [vmem:[%s267 + $0x10] sm:$0xff]
        %v304 = vld [vmem:[%s267 + $0x18] sm:$0xff]
        %v305 = vld [vmem:[%s0] sm:$0xff]
        %v306 = vld [vmem:[%s0 + $0x8] sm:$0xf]
        %v307 = vld [vmem:[%s1] sm:$0xff]
        %v308 = vld [vmem:[%s1 + $0x8] sm:$0xf]
        %310 = vset.pattern.permute.xlu0 0
        %311 = vperm.xlu0 %310, %v307
        %v312 = vpop.permute.xlu0 %311
        %315 = vset.pattern.permute.xlu0 0
        %316 = vperm.xlu0 %315, %v308
        %v317 = vpop.permute.xlu0 %316
        %vm319 = vcmask 64512
        %v321 = vsel %vm319, %v305, 0
        %v324 = vsel %vm319, %v306, 0
        %326 = vmatpush.msra.mxu0 0.0
        %327 = vmatpush.msra.mxu0 0.0
        %328 = vmatpush.msra.mxu0 0.0
        %329 = vmatpush.msra.mxu0 0.0
        %330 = vmatpush.msra.mxu0 0.0
        %331 = vmatpush.msra.mxu0 0.0
        %332 = vmatpush.msra.mxu0 0.0
        %333 = vmatpush.msra.mxu0 0.0
        %334 = vmatpush.msra.mxu0 0.0
        %335 = vmatpush.msra.mxu0 0.0
        %336 = vmatpush.msra.mxu0 0.0
        %337 = vmatpush.msra.mxu0 0.0
        %338 = vmatpush.msra.mxu0 0.0
        %339 = vmatpush.msra.mxu0 0.0
        %340 = vmatpush.msra.mxu0 0.0
        %341 = vmatpush.msra.mxu0 %v301
        %342 = vmatmul.f32.gmra.mxu0 %v321
        %v343 = vpop.f32.mrf.mxu0
        %v344 = vadd.f32 %v312, %v343
        %345 = vmatmul.f32.gmra.mxu0 %v324
        %v346 = vpop.f32.mrf.mxu0
        %v347 = vadd.f32 %v317, %v346
        %348 = vdwg.mxu0
        %349 = vmatpush.msra.mxu0 0.0
        %350 = vmatpush.msra.mxu0 0.0
        %351 = vmatpush.msra.mxu0 0.0
        %352 = vmatpush.msra.mxu0 0.0
        %353 = vmatpush.msra.mxu0 0.0
        %354 = vmatpush.msra.mxu0 0.0
        %355 = vmatpush.msra.mxu0 0.0
        %356 = vmatpush.msra.mxu0 0.0
        %357 = vmatpush.msra.mxu0 0.0
        %358 = vmatpush.msra.mxu0 0.0
        %359 = vmatpush.msra.mxu0 0.0
        %360 = vmatpush.msra.mxu0 0.0
        %361 = vmatpush.msra.mxu0 0.0
        %362 = vmatpush.msra.mxu0 0.0
        %363 = vmatpush.msra.mxu0 0.0
        %364 = vmatpush.msra.mxu0 %v302
        %365 = vmatmul.f32.gmra.mxu0 %v321
        %v366 = vpop.f32.mrf.mxu0
        %v367 = vadd.f32 %v312, %v366
        %368 = vmatmul.f32.gmra.mxu0 %v324
        %v369 = vpop.f32.mrf.mxu0
        %v370 = vadd.f32 %v317, %v369
        %371 = vdwg.mxu0
        %372 = vmatpush.msra.mxu0 0.0
        %373 = vmatpush.msra.mxu0 0.0
        %374 = vmatpush.msra.mxu0 0.0
        %375 = vmatpush.msra.mxu0 0.0
        %376 = vmatpush.msra.mxu0 0.0
        %377 = vmatpush.msra.mxu0 0.0
        %378 = vmatpush.msra.mxu0 0.0
        %379 = vmatpush.msra.mxu0 0.0
        %380 = vmatpush.msra.mxu0 0.0
        %381 = vmatpush.msra.mxu0 0.0
        %382 = vmatpush.msra.mxu0 0.0
        %383 = vmatpush.msra.mxu0 0.0
        %384 = vmatpush.msra.mxu0 0.0
        %385 = vmatpush.msra.mxu0 0.0
        %386 = vmatpush.msra.mxu0 0.0
        %387 = vmatpush.msra.mxu0 %v303
        %388 = vmatmul.f32.gmra.mxu0 %v321
        %v389 = vpop.f32.mrf.mxu0
        %v390 = vadd.f32 %v312, %v389
        %391 = vmatmul.f32.gmra.mxu0 %v324
        %v392 = vpop.f32.mrf.mxu0
        %v393 = vadd.f32 %v317, %v392
        %394 = vdwg.mxu0
        %395 = vmatpush.msra.mxu0 0.0
        %396 = vmatpush.msra.mxu0 0.0
        %397 = vmatpush.msra.mxu0 0.0
        %398 = vmatpush.msra.mxu0 0.0
        %399 = vmatpush.msra.mxu0 0.0
        %400 = vmatpush.msra.mxu0 0.0
        %401 = vmatpush.msra.mxu0 0.0
        %402 = vmatpush.msra.mxu0 0.0
        %403 = vmatpush.msra.mxu0 0.0
        %404 = vmatpush.msra.mxu0 0.0
        %405 = vmatpush.msra.mxu0 0.0
        %406 = vmatpush.msra.mxu0 0.0
        %407 = vmatpush.msra.mxu0 0.0
        %408 = vmatpush.msra.mxu0 0.0
        %409 = vmatpush.msra.mxu0 0.0
        %410 = vmatpush.msra.mxu0 %v304
        %411 = vmatmul.f32.gmra.mxu0 %v321
        %v412 = vpop.f32.mrf.mxu0
        %v413 = vadd.f32 %v312, %v412
        %414 = vmatmul.f32.gmra.mxu0 %v324
        %v415 = vpop.f32.mrf.mxu0
        %v416 = vadd.f32 %v317, %v415
        %417 = vdwg.mxu0
        %v418 = vmax.f32 %v344, 0.0
        %v419 = vmax.f32 %v367, 0.0
        %v420 = vmax.f32 %v390, 0.0
        %v421 = vmax.f32 %v413, 0.0
        %v422 = vmax.f32 %v347, 0.0
        %v423 = vmax.f32 %v370, 0.0
        %v424 = vmax.f32 %v393, 0.0
        %v425 = vmax.f32 %v416, 0.0
        %v426 = vld [vmem:[%s2] sm:$0xff]
        %v427 = vld [vmem:[%s3] sm:$0xff]
        %429 = vset.pattern.permute.xlu0 0
        %430 = vperm.xlu0 %429, %v427
        %v431 = vpop.permute.xlu0 %430
        %vm433 = vcmask 97280
        %v435 = vsel %vm433, %v426, 0
        %vm437 = vcmask 1043456
        %v439 = vsel %vm437, %v422, 0
        %v442 = vsel %vm437, %v423, 0
        %v445 = vsel %vm437, %v424, 0
        %v448 = vsel %vm437, %v425, 0
        %450 = vmatpush.msra.mxu0 0.0
        %451 = vmatpush.msra.mxu0 0.0
        %452 = vmatpush.msra.mxu0 0.0
        %453 = vmatpush.msra.mxu0 0.0
        %454 = vmatpush.msra.mxu0 0.0
        %455 = vmatpush.msra.mxu0 0.0
        %456 = vmatpush.msra.mxu0 0.0
        %457 = vmatpush.msra.mxu0 0.0
        %458 = vmatpush.msra.mxu0 0.0
        %459 = vmatpush.msra.mxu0 0.0
        %460 = vmatpush.msra.mxu0 0.0
        %461 = vmatpush.msra.mxu0 0.0
        %462 = vmatpush.msra.mxu0 0.0
        %463 = vmatpush.msra.mxu0 0.0
        %464 = vmatpush.msra.mxu0 %v439
        %465 = vmatpush.msra.mxu0 %v418
        %466 = vmatmul.f32.gmra.mxu0 %v435
        %v467 = vpop.f32.mrf.mxu0
        %v468 = vadd.f32 %v431, %v467
        %469 = vdwg.mxu0
        %470 = vmatpush.msra.mxu0 0.0
        %471 = vmatpush.msra.mxu0 0.0
        %472 = vmatpush.msra.mxu0 0.0
        %473 = vmatpush.msra.mxu0 0.0
        %474 = vmatpush.msra.mxu0 0.0
        %475 = vmatpush.msra.mxu0 0.0
        %476 = vmatpush.msra.mxu0 0.0
        %477 = vmatpush.msra.mxu0 0.0
        %478 = vmatpush.msra.mxu0 0.0
        %479 = vmatpush.msra.mxu0 0.0
        %480 = vmatpush.msra.mxu0 0.0
        %481 = vmatpush.msra.mxu0 0.0
        %482 = vmatpush.msra.mxu0 0.0
        %483 = vmatpush.msra.mxu0 0.0
        %484 = vmatpush.msra.mxu0 %v442
        %485 = vmatpush.msra.mxu0 %v419
        %486 = vmatmul.f32.gmra.mxu0 %v435
        %v487 = vpop.f32.mrf.mxu0
        %v488 = vadd.f32 %v431, %v487
        %489 = vdwg.mxu0
        %490 = vmatpush.msra.mxu0 0.0
        %491 = vmatpush.msra.mxu0 0.0
        %492 = vmatpush.msra.mxu0 0.0
        %493 = vmatpush.msra.mxu0 0.0
        %494 = vmatpush.msra.mxu0 0.0
        %495 = vmatpush.msra.mxu0 0.0
        %496 = vmatpush.msra.mxu0 0.0
        %497 = vmatpush.msra.mxu0 0.0
        %498 = vmatpush.msra.mxu0 0.0
        %499 = vmatpush.msra.mxu0 0.0
        %500 = vmatpush.msra.mxu0 0.0
        %501 = vmatpush.msra.mxu0 0.0
        %502 = vmatpush.msra.mxu0 0.0
        %503 = vmatpush.msra.mxu0 0.0
        %504 = vmatpush.msra.mxu0 %v445
        %505 = vmatpush.msra.mxu0 %v420
        %506 = vmatmul.f32.gmra.mxu0 %v435
        %v507 = vpop.f32.mrf.mxu0
        %v508 = vadd.f32 %v431, %v507
        %509 = vdwg.mxu0
        %510 = vmatpush.msra.mxu0 0.0
        %511 = vmatpush.msra.mxu0 0.0
        %512 = vmatpush.msra.mxu0 0.0
        %513 = vmatpush.msra.mxu0 0.0
        %514 = vmatpush.msra.mxu0 0.0
        %515 = vmatpush.msra.mxu0 0.0
        %516 = vmatpush.msra.mxu0 0.0
        %517 = vmatpush.msra.mxu0 0.0
        %518 = vmatpush.msra.mxu0 0.0
        %519 = vmatpush.msra.mxu0 0.0
        %520 = vmatpush.msra.mxu0 0.0
        %521 = vmatpush.msra.mxu0 0.0
        %522 = vmatpush.msra.mxu0 0.0
        %523 = vmatpush.msra.mxu0 0.0
        %524 = vmatpush.msra.mxu0 %v448
        %525 = vmatpush.msra.mxu0 %v421
        %526 = vmatmul.f32.gmra.mxu0 %v435
        %v527 = vpop.f32.mrf.mxu0
        %v528 = vadd.f32 %v431, %v527
        %529 = vdwg.mxu0
        %v530 = vmax.f32 %v468, 0.0
        %v531 = vmax.f32 %v488, 0.0
        %v532 = vmax.f32 %v508, 0.0
        %v533 = vmax.f32 %v528, 0.0
        %v534 = vld [vmem:[%s4] sm:$0xff]
        %536 = vset.pattern.permute.xlu0 0
        %537 = vperm.xlu0 %536, %v534
        %v538 = vpop.permute.xlu0 %537
        %v540 = vmul.f32 %v530, %v538
        %v541 = vmul.f32 %v531, %v538
        %v542 = vmul.f32 %v532, %v538
        %v543 = vmul.f32 %v533, %v538
        %v544 = vrot.slane %v540, 4
        %v545 = vadd.f32 %v540, %v544
        %v546 = vrot.slane %v545, 2
        %v547 = vadd.f32 %v545, %v546
        %v548 = vrot.slane %v547, 1
        %v549 = vadd.f32 %v547, %v548
        %v550 = vrot.slane %v541, 4
        %v551 = vadd.f32 %v541, %v550
        %v552 = vrot.slane %v551, 2
        %v553 = vadd.f32 %v551, %v552
        %v554 = vrot.slane %v553, 1
        %v555 = vadd.f32 %v553, %v554
        %v556 = vrot.slane %v542, 4
        %v557 = vadd.f32 %v542, %v556
        %v558 = vrot.slane %v557, 2
        %v559 = vadd.f32 %v557, %v558
        %v560 = vrot.slane %v559, 1
        %v561 = vadd.f32 %v559, %v560
        %v562 = vrot.slane %v543, 4
        %v563 = vadd.f32 %v543, %v562
        %v564 = vrot.slane %v563, 2
        %v565 = vadd.f32 %v563, %v564
        %v566 = vrot.slane %v565, 1
        %v567 = vadd.f32 %v565, %v566
        %v568 = vld [vmem:[#allocation2] sm:$0x1]
        %570 = vset.pattern.permute.xlu0 0
        %571 = vperm.xlu0 %570, %v568
        %v572 = vpop.permute.xlu0 %571
        %v574 = vperm.slane %v572, 0
        %v575 = vadd.f32 %v549, %v574
        %v576 = vadd.f32 %v555, %v574
        %v577 = vadd.f32 %v561, %v574
        %v578 = vadd.f32 %v567, %v574
        %v579 = vxor.u32 %v575, 2147483648
        %v580 = vxor.u32 %v576, 2147483648
        %v581 = vxor.u32 %v577, 2147483648
        %v582 = vxor.u32 %v578, 2147483648
        %v583 = vmul.f32 %v579, 1.442695
        %v584 = vpow.pop %v583
        %v585 = vmul.f32 %v580, 1.442695
        %v586 = vpow.pop %v585
        %v587 = vmul.f32 %v581, 1.442695
        %v588 = vpow.pop %v587
        %v589 = vmul.f32 %v582, 1.442695
        %v590 = vpow.pop %v589
        %v591 = vadd.f32 %v584, 1.0
        %v592 = vadd.f32 %v586, 1.0
        %v593 = vadd.f32 %v588, 1.0
        %v594 = vadd.f32 %v590, 1.0
        %v595 = vrcp.pop %v591
        %v596 = vmul.f32 %v591, %v595
        %v597 = vsub.f32 1.0, %v596
        %v598 = vmul.f32 %v595, %v597
        %v599 = vadd.f32 %v595, %v598
        %vm600 = vweird.f32 %v591
        %vm601 = vweird.f32 %v595
        %vm602 = vmor %vm600, %vm601
        %v603 = vsel %vm602, %v595, %v599
        %v604 = vand.u32 2147483647, %v591
        %vm605 = vcmp.eq.f32.partialorder %v604, 8.507059e+37
        %v606 = vand.u32 %v591, 2147483648
        %v607 = vor.u32 1.1754944e-38, %v606
        %v608 = vsel %vm605, %v607, %v603
        %v609 = vmul.f32 1.0, %v608
        %v610 = vrcp.pop %v592
        %v611 = vmul.f32 %v592, %v610
        %v612 = vsub.f32 1.0, %v611
        %v613 = vmul.f32 %v610, %v612
        %v614 = vadd.f32 %v610, %v613
        %vm615 = vweird.f32 %v592
        %vm616 = vweird.f32 %v610
        %vm617 = vmor %vm615, %vm616
        %v618 = vsel %vm617, %v610, %v614
        %v619 = vand.u32 2147483647, %v592
        %vm620 = vcmp.eq.f32.partialorder %v619, 8.507059e+37
        %v621 = vand.u32 %v592, 2147483648
        %v622 = vor.u32 1.1754944e-38, %v621
        %v623 = vsel %vm620, %v622, %v618
        %v624 = vmul.f32 1.0, %v623
        %v625 = vrcp.pop %v593
        %v626 = vmul.f32 %v593, %v625
        %v627 = vsub.f32 1.0, %v626
        %v628 = vmul.f32 %v625, %v627
        %v629 = vadd.f32 %v625, %v628
        %vm630 = vweird.f32 %v593
        %vm631 = vweird.f32 %v625
        %vm632 = vmor %vm630, %vm631
        %v633 = vsel %vm632, %v625, %v629
        %v634 = vand.u32 2147483647, %v593
        %vm635 = vcmp.eq.f32.partialorder %v634, 8.507059e+37
        %v636 = vand.u32 %v593, 2147483648
        %v637 = vor.u32 1.1754944e-38, %v636
        %v638 = vsel %vm635, %v637, %v633
        %v639 = vmul.f32 1.0, %v638
        %v640 = vrcp.pop %v594
        %v641 = vmul.f32 %v594, %v640
        %v642 = vsub.f32 1.0, %v641
        %v643 = vmul.f32 %v640, %v642
        %v644 = vadd.f32 %v640, %v643
        %vm645 = vweird.f32 %v594
        %vm646 = vweird.f32 %v640
        %vm647 = vmor %vm645, %vm646
        %v648 = vsel %vm647, %v640, %v644
        %v649 = vand.u32 2147483647, %v594
        %vm650 = vcmp.eq.f32.partialorder %v649, 8.507059e+37
        %v651 = vand.u32 %v594, 2147483648
        %v652 = vor.u32 1.1754944e-38, %v651
        %v653 = vsel %vm650, %v652, %v648
        %v654 = vmul.f32 1.0, %v653
        %v659 = vrot.slane %v624, 7
        %v660 = vrot.slane %v639, 6
        %v661 = vrot.slane %v654, 5
        %vm662 = vcmask 1040384
        %v663 = vsel %vm662, %v609, %v659
        %vm664 = vcmask 1042434
        %v665 = vsel %vm664, %v660, %v661
        %vm666 = vcmask 1041408
        %v667 = vsel %vm666, %v663, %v665
        %v669 = vlaneseq
        %vm670 = vcmp.ge.s32.totalorder %v669, 0
        %vm671 = vcmp.lt.s32.totalorder %v669, 512
        %vm672 = vmand %vm670, %vm671
        %673 = vst.msk [vmem:[%s298] sm:$0xf] %vm672, %v667
        %s674 = sand.u32 %s186, 1
        %s675 = scalar_lea.sflag [#allocation5], %s674
        %s676 = sand.u32 %s186, 1
        %s677 = smul.addr %s676, 4
        %s678 = scalar_lea.vmem [#allocation6], %s677
        // Predicated region
        $region53: #{tpu_custom_call.1} parent=47 // pred_check
          %p679 = pneg %p196
        $region54: #{tpu_custom_call.1} parent=47 // pred_check_branch
          %681 = sbr.rel (%p679) target = $region56
        $region55: #{tpu_custom_call.1} parent=47 // pred_region
          %s682 = smul.u32 4, %s26
          %684 = vsyncadd %s675, 0
          %s685 = scalar_lea.hbm %s7, %s682
          %s687 = sshll.u32 %s678, 4
          %s688 = int_to_ptr.vmem [resolvable:$true] %s687
          %s689 = sshll.u32 %s685, 4
          %s690 = int_to_ptr.hbm [resolvable:$true] %s689
          %692 = dma.vmem_to_hbm [thread:$0]  %s688, 64, %s690, %s675
        $region56: #{tpu_custom_call.1} parent=47 // pred_fallthru
          _
      $region48: #{tpu_custom_call.1} parent=5 // pred_fallthru
        _
      %p693 = scmp.le.s32.totalorder 2, %s21
      // Predicated region
      $region57: #{tpu_custom_call.1} parent=5 // pred_check
        %p694 = pneg %p693
      $region58: #{tpu_custom_call.1} parent=5 // pred_check_branch
        %696 = sbr.rel (%p694) target = $region60
      $region59: #{tpu_custom_call.1} parent=5 // pred_region
        %s697 = ssub.s32 %s21, 2
        // Predicated region
        $region61: #{tpu_custom_call.1} parent=59 // pred_check
          %p698 = pneg %p202
        $region62: #{tpu_custom_call.1} parent=59 // pred_check_branch
          %700 = sbr.rel (%p698) target = $region64
        $region63: #{tpu_custom_call.1} parent=59 // pred_region
          %s701 = sand.u32 %s187, 1
          %s702 = scalar_lea.sflag [#allocation5], %s701
          %s703 = sand.u32 %s187, 1
          %s704 = smul.addr %s703, 4
          %s705 = scalar_lea.vmem [#allocation6], %s704
          %707 = dma.done %s702, 64
        $region64: #{tpu_custom_call.1} parent=59 // pred_fallthru
          _
      $region60: #{tpu_custom_call.1} parent=5 // pred_fallthru
        _
    $region6: #{tpu_custom_call.1} parent=1 // loop_footer
      %s25 = sadd.s32 1, %s21
    $region7: #{tpu_custom_call.1} parent=1 // loop_footer_branch
      %20 = sbr.rel target = $region3
    $region8: #{tpu_custom_call.1} parent=1 // loop_exit
      _
    %708 = vsyncpa [#allocation4], 1
    %s709 = scalar_lea.sflag [#allocation4], 1
    %710 = vsyncpa %s709, 1
    %711 = vsyncpa [#allocation5], 1
    %s712 = scalar_lea.sflag [#allocation5], 1
    %713 = vsyncpa %s712, 1

</llo_original>
